<compile_context>
chip_gen: v7x
topology: tpu7x:2x2x1
jax: 0.10.0
libtpu: 0.0.40
codegen_flags: <defaults>
</compile_context>

<pallas_src>
import jax
import jax.numpy as jnp
from jax import lax
from jax.experimental import pallas as pl
from jax.experimental.pallas import tpu as pltpu

# ------------------------- problem sizes (small, synthetic) -------------------------
CHANNEL = 128       # embedding dim, lane-dense (paper uses 100 -> padded to 128)
N_USERS = 8
N_FACTORS = 4
N_RELATIONS = 5     # relation table rows; learnable `weight` has n_relations-1 rows
N_NEWS = 64
K_NEWS = 5          # entity neighbours per news item
N_ENTITY = 192
K_ENT = 20          # fixed 20 neighbours per entity (as in the reference)
N_NODES = N_NEWS + N_ENTITY   # 256
N_HOPS = 2
NODE_DROPOUT_RATE = 0.5       # reference keeps with prob == rate, rescales 1/(1-rate)
MESS_DROPOUT_RATE = 0.1


# ------------------------------ small helpers ------------------------------
def _round_up(x, m):
    return (x + m - 1) // m * m


def _row_block(n, max_block=512):
    """Row block: multiple of 8, divides n, >= 2 grid steps when possible."""
    if n <= 8:
        return n
    b = min(n // 2, max_block)
    b -= b % 8
    while b > 8 and n % b != 0:
        b -= 8
    return b if (b >= 8 and n % b == 0) else n


# ---------------- Pallas kernel 1: node aggregation (count-matrix MXU matmul) ----------------
# out[rows] = A[rows] @ T + self[rows]
#   A already encodes: mean over K neighbours of (entity/rel rows) + the news
#   relation-0 contribution, so no per-row gathers remain.
def _node_agg_kernel(a_ref, tbl_ref, self_ref, out_ref):
    agg = jnp.dot(a_ref[...], tbl_ref[...], preferred_element_type=jnp.float32)
    out_ref[...] = (agg + self_ref[...]).astype(out_ref.dtype)


def node_aggregate(count_mat, gather_tbl, self_emb, blk_rows=128):
    n, d = self_emb.shape
    p = gather_tbl.shape[0]
    if n % blk_rows != 0:
        blk_rows = _row_block(n)
    # TODO(synk): at production table sizes, single-buffer the constant T block
    # (pipeline_mode=pl.Buffered(1)) or move it to pl.ANY + one manual copy so
    # the resident footprint fits v7x's 64 MiB VMEM; cast MXU operands to bf16.
    return pl.pallas_call(
        _node_agg_kernel,
        out_shape=jax.ShapeDtypeStruct((n, d), jnp.float32),
        grid=(n // blk_rows,),
        in_specs=[
            pl.BlockSpec((blk_rows, p), lambda i: (i, 0)),
            pl.BlockSpec((p, d), lambda i: (0, 0)),
            pl.BlockSpec((blk_rows, d), lambda i: (i, 0)),
        ],
        out_specs=pl.BlockSpec((blk_rows, d), lambda i: (i, 0)),
        compiler_params=pltpu.CompilerParams(dimension_semantics=("parallel",)),
    )(count_mat, gather_tbl, self_emb)


# ---------------- Pallas kernel 2: fused user aggregation (single step) ----------------
# ua    = interact_dropped @ node_emb                      (MXU)
# score = softmax(user_emb @ latent_emb.T, axis=1)
# out   = ua * (score @ disen + 1)      (disen = softmax(disen_att) @ weight, precomputed)
def _user_agg_kernel(interact_ref, node_ref, user_ref, latent_ref, disen_ref, out_ref):
    ua = jnp.dot(interact_ref[...], node_ref[...], preferred_element_type=jnp.float32)
    logits = lax.dot_general(user_ref[...], latent_ref[...],
                             (((1,), (1,)), ((), ())),
                             preferred_element_type=jnp.float32)        # (U, F)
    logits = logits - jnp.max(logits, axis=1, keepdims=True)
    e = jnp.exp(logits)
    score = e / jnp.sum(e, axis=1, keepdims=True)
    mix = jnp.dot(score, disen_ref[...], preferred_element_type=jnp.float32)  # (U, d)
    out_ref[...] = (ua * (mix + 1.0)).astype(out_ref.dtype)             # ua*mix + ua


def fused_user_aggregate(interact_dropped, node_emb, user_emb, latent_emb, disen):
    n_users, n_nodes = interact_dropped.shape
    d = node_emb.shape[1]
    f = latent_emb.shape[0]
    # Everything (8x256 + 256x128 + small params) fits VMEM -> single grid step,
    # no k-tiling / accumulator scratch.
    # TODO(synk): at production n_nodes/n_users, tile the contraction by >=512
    # (multiple of 256 on v6e/v7x) and the user axis by 256 on a "parallel" axis.
    return pl.pallas_call(
        _user_agg_kernel,
        out_shape=jax.ShapeDtypeStruct((n_users, d), jnp.float32),
        grid=(1,),
        in_specs=[
            pl.BlockSpec((n_users, n_nodes), lambda i: (0, 0)),
            pl.BlockSpec((n_nodes, d), lambda i: (0, 0)),
            pl.BlockSpec((n_users, d), lambda i: (0, 0)),
            pl.BlockSpec((f, d), lambda i: (0, 0)),
            pl.BlockSpec((f, d), lambda i: (0, 0)),
        ],
        out_specs=pl.BlockSpec((n_users, d), lambda i: (0, 0)),
        compiler_params=pltpu.CompilerParams(dimension_semantics=("arbitrary",)),
    )(interact_dropped, node_emb, user_emb, latent_emb, disen)


# ---------------- Pallas kernel 3: mess dropout + F.normalize(dim=1) + residual add ----------------
# mask is precomputed in the wrapper (values in {0, 1/(1-p)} or all ones).
def _dropout_norm_residual_kernel(x_ref, mask_ref, res_ref, out_ref):
    x = x_ref[...].astype(jnp.float32) * mask_ref[...]
    # F.normalize: x / max(||x||_2, 1e-12) == x * rsqrt(max(sum(x^2), 1e-24))
    ss = jnp.sum(x * x, axis=1, keepdims=True)
    out_ref[...] = (res_ref[...] + x * lax.rsqrt(jnp.maximum(ss, 1e-24))).astype(out_ref.dtype)


def dropout_normalize_add(x, mask, res, blk_rows):
    n, d = x.shape
    return pl.pallas_call(
        _dropout_norm_residual_kernel,
        out_shape=jax.ShapeDtypeStruct((n, d), res.dtype),
        grid=(n // blk_rows,),
        in_specs=[pl.BlockSpec((blk_rows, d), lambda i: (i, 0)),
                  pl.BlockSpec((blk_rows, d), lambda i: (i, 0)),
                  pl.BlockSpec((blk_rows, d), lambda i: (i, 0))],
        out_specs=pl.BlockSpec((blk_rows, d), lambda i: (i, 0)),
        compiler_params=pltpu.CompilerParams(dimension_semantics=("parallel",)),
    )(x, mask, res)


# ---------------- plain-JAX glue: _cul_cor (ind='cosine') ----------------
def cul_cor_cosine(disen_weight_att):
    # sum over factor pairs (i<j) of squared cosine similarity of the rows
    wn = disen_weight_att / jnp.linalg.norm(disen_weight_att, axis=1, keepdims=True)
    sim2 = (wn @ wn.T) ** 2
    f = disen_weight_att.shape[0]
    mask = jnp.triu(jnp.ones((f, f), dtype=bool), k=1)
    return jnp.sum(jnp.where(mask, sim2, 0.0))
    # TODO(synk): 'distance' and 'mi' variants of _cul_cor not implemented (config-dependent).


# ---------------- hop-invariant count matrix / gather table construction ----------------
def build_gather_tables(all_emb, entity_emb, relation_emb, idx):
    """Columns of the gather table T:
         [0, N_ENTITY)            -> original entity_emb       (news neighbours)
         [N_ENTITY, 2*N_ENTITY)   -> all_emb[entities]         (entity neighbours,
                                     matches the reference's rebound entity_emb)
         [2*N_ENTITY, +N_REL)     -> relation_emb
       A[n, :] holds the 1/K-scaled neighbour counts, so A @ T is exactly the
       reference's mean over neighbours (news rel-0 term folded in with weight 1)."""
    n_entity, d = entity_emb.shape
    n_news, k_news = idx["news_entities"].shape
    n_ent_rows, k_ent = idx["neigh_entities"].shape
    n_nodes = n_news + n_ent_rows

    ent_self = all_emb[idx["entities"]]            # (N_ENTITY, d)
    news_self = all_emb[idx["newsid"]]             # (N_NEWS, d)

    tbl_rows = 2 * n_entity + relation_emb.shape[0]
    tbl_pad = _round_up(tbl_rows, 128)
    gather_tbl = jnp.zeros((tbl_pad, d), jnp.float32)
    gather_tbl = gather_tbl.at[:n_entity].set(entity_emb)
    gather_tbl = gather_tbl.at[n_entity:2 * n_entity].set(ent_self)
    gather_tbl = gather_tbl.at[2 * n_entity:tbl_rows].set(relation_emb)

    A = jnp.zeros((n_nodes, tbl_pad), jnp.float32)
    news_rows = jnp.repeat(jnp.arange(n_news, dtype=jnp.int32), k_news)
    A = A.at[news_rows, idx["news_entities"].reshape(-1)].add(1.0 / k_news)
    # all news relations are index 0: mean_k(ent + rel0) == mean_k(ent) + rel0
    A = A.at[jnp.arange(n_news, dtype=jnp.int32), 2 * n_entity].add(1.0)
    ent_rows = n_news + jnp.repeat(jnp.arange(n_ent_rows, dtype=jnp.int32), k_ent)
    A = A.at[ent_rows, n_entity + idx["neigh_entities"].reshape(-1)].add(1.0 / k_ent)
    A = A.at[ent_rows, 2 * n_entity + idx["neigh_relations"].reshape(-1)].add(1.0 / k_ent)

    self_emb = jnp.concatenate([news_self, ent_self], axis=0)   # (N_NODES, d)
    return A, gather_tbl, self_emb


# ---------------- GraphConv.forward ----------------
def graphconv_forward(user_emb, all_emb, entity_emb, relation_emb, latent_emb,
                      interact, weight, disen_att, idx, key, mess_dropout=True):
    n_users = user_emb.shape[0]
    n_nodes = all_emb.shape[0]

    # node ("sparse") dropout on interact: reference keeps an entry with
    # probability == rate and rescales by 1/(1-rate), applied ONCE before the hop loop.
    key, k_node = jax.random.split(key)
    keep = jax.random.bernoulli(k_node, NODE_DROPOUT_RATE, interact.shape)
    interact_dropped = (interact * keep.astype(interact.dtype)
                        / (1.0 - NODE_DROPOUT_RATE))

    # hop- and user-invariant parameter math, hoisted out of kernels:
    # disen_weight = softmax(disen_weight_att, -1) @ weight
    disen = jax.nn.softmax(disen_att, axis=-1) @ weight          # (F, d)

    cor = cul_cor_cosine(disen_att)

    # The reference feeds the SAME original embeddings and the once-dropped
    # interact matrix to every hop, so the aggregator output is hop-invariant:
    # compute node_emb / user_agg exactly once.
    A, gather_tbl, self_emb = build_gather_tables(all_emb, entity_emb, relation_emb, idx)
    node_emb = node_aggregate(A, gather_tbl, self_emb)           # (N_NODES, d)
    user_agg = fused_user_aggregate(interact_dropped, node_emb, user_emb,
                                    latent_emb, disen)           # (U, d)

    # Stack node + user streams so each hop is ONE fused dropout+normalize+add kernel.
    x = jnp.concatenate([node_emb, user_agg], axis=0)            # (N_NODES+U, d)
    res = jnp.concatenate([all_emb, user_emb], axis=0).astype(jnp.float32)
    blk = _row_block(x.shape[0])
    ones = jnp.ones(x.shape, jnp.float32)
    for _ in range(N_HOPS):
        if mess_dropout:
            key, k_m = jax.random.split(key)
            mask = jax.random.bernoulli(k_m, 1.0 - MESS_DROPOUT_RATE, x.shape)
            mask = mask.astype(jnp.float32) / (1.0 - MESS_DROPOUT_RATE)
        else:
            mask = ones
        res = dropout_normalize_add(x, mask, res, blk)

    node_res = res[:n_nodes]
    user_res = res[n_nodes:]
    return user_res, node_res, cor


# ---------------- demo ----------------
if __name__ == "__main__":
    key = jax.random.PRNGKey(0)
    ks = jax.random.split(key, 16)
    f32 = jnp.float32

    user_emb = jax.random.normal(ks[0], (N_USERS, CHANNEL), f32)
    all_emb = jax.random.normal(ks[1], (N_NODES, CHANNEL), f32)
    entity_emb = jax.random.normal(ks[2], (N_ENTITY, CHANNEL), f32)
    relation_emb = jax.random.normal(ks[3], (N_RELATIONS, CHANNEL), f32)
    latent_emb = jax.random.normal(ks[4], (N_FACTORS, CHANNEL), f32)

    # dense representation of the sparse user-node interaction matrix
    nz_mask = jax.random.bernoulli(ks[5], 0.3, (N_USERS, N_NODES))
    interact = jnp.where(nz_mask,
                         jax.random.uniform(ks[6], (N_USERS, N_NODES), f32),
                         jnp.zeros((), f32))

    # deterministic xavier_uniform parameters
    def xavier(k, shape):
        fan_out, fan_in = shape
        bound = (6.0 / (fan_in + fan_out)) ** 0.5
        return jax.random.uniform(k, shape, f32, -bound, bound)

    weight = xavier(ks[7], (N_RELATIONS - 1, CHANNEL))           # (4, 128)
    disen_att = xavier(ks[8], (N_FACTORS, N_RELATIONS - 1))      # (4, 4)

    # synthetic graph structure (what news_entity_dict / entity_adj / relation_adj encode);
    # news relations are all index 0 in the reference, so they are not materialised.
    idx = dict(
        newsid=jnp.arange(N_NEWS, dtype=jnp.int32),
        news_entities=jax.random.randint(ks[9], (N_NEWS, K_NEWS), 0, N_ENTITY,
                                         dtype=jnp.int32),
        entities=jnp.arange(N_ENTITY, dtype=jnp.int32),
        neigh_entities=jax.random.randint(ks[10], (N_ENTITY, K_ENT), 0, N_ENTITY,
                                          dtype=jnp.int32),
        neigh_relations=jax.random.randint(ks[11], (N_ENTITY, K_ENT), 0, N_RELATIONS,
                                           dtype=jnp.int32),
    )

    user_res, node_res, cor = graphconv_forward(
        user_emb, all_emb, entity_emb, relation_emb, latent_emb,
        interact, weight, disen_att, idx, ks[12], mess_dropout=True)

    user_res = jax.block_until_ready(user_res)
    node_res = jax.block_until_ready(node_res)
    cor = jax.block_until_ready(cor)

    assert user_res.shape == (N_USERS, CHANNEL)
    assert node_res.shape == (N_NODES, CHANNEL)
    assert bool(jnp.all(jnp.isfinite(user_res)))
    assert bool(jnp.all(jnp.isfinite(node_res)))
    assert bool(jnp.isfinite(cor))
    print("KERNEL_OK")
</pallas_src>

<mosaic_0001>
module attributes {stable_mosaic.version = 11 : i64} {
  func.func @_node_agg_kernel(%arg0: i32, %arg1: memref<128x512xf32, #tpu.memory_space<vmem>>, %arg2: memref<512x128xf32, #tpu.memory_space<vmem>>, %arg3: memref<128x128xf32, #tpu.memory_space<vmem>>, %arg4: memref<128x128xf32, #tpu.memory_space<vmem>>) attributes {dimension_semantics = [#tpu.dimension_semantics<parallel>], iteration_bounds = array<i64: 2>, scalar_prefetch = 0 : i64, scratch_operands = 0 : i64, tpu.core_type = #tpu.core_type<tc>, window_params = [{transform_indices = @transform_0, window_bounds = array<i64: 128, 512>}, {pipeline_mode = #tpu.pipeline_mode<synchronous>, transform_indices = @transform_1, window_bounds = array<i64: 512, 128>}, {transform_indices = @transform_2, window_bounds = array<i64: 128, 128>}, {transform_indices = @transform_3, window_bounds = array<i64: 128, 128>}]} {
    %c0 = arith.constant 0 : index
    %c0_0 = arith.constant 0 : index
    %0 = vector.load %arg1[%c0, %c0_0] : memref<128x512xf32, #tpu.memory_space<vmem>>, vector<128x512xf32>
    %c0_1 = arith.constant 0 : index
    %c0_2 = arith.constant 0 : index
    %1 = vector.load %arg2[%c0_1, %c0_2] : memref<512x128xf32, #tpu.memory_space<vmem>>, vector<512x128xf32>
    %cst = arith.constant dense<0.000000e+00> : vector<128x128xf32>
    %2 = tpu.matmul %0, %1, %cst {dimension_numbers = #tpu.dot_dimension_numbers<[1], [0], [0], [1], [0, 0, 1, 1], [], []>} : vector<128x512xf32>, vector<512x128xf32>, vector<128x128xf32> -> vector<128x128xf32>
    %c0_3 = arith.constant 0 : index
    %c0_4 = arith.constant 0 : index
    %3 = vector.load %arg3[%c0_3, %c0_4] : memref<128x128xf32, #tpu.memory_space<vmem>>, vector<128x128xf32>
    %4 = arith.addf %2, %3 : vector<128x128xf32>
    %c0_5 = arith.constant 0 : index
    %c0_6 = arith.constant 0 : index
    %5 = vector.load %arg4[%c0_5, %c0_6] : memref<128x128xf32, #tpu.memory_space<vmem>>, vector<128x128xf32>
    tpu.vector_store %arg4[%c0_5, %c0_6], %4 {strides = array<i32>} : memref<128x128xf32, #tpu.memory_space<vmem>>, vector<128x128xf32>,
    return
  }
  func.func @transform_0(%arg0: i32) -> (i32, i32) {
    %c0_i32 = arith.constant 0 : i32
    %c0_i32_0 = arith.constant 0 : i32
    return %arg0, %c0_i32 : i32, i32
  }
  func.func @transform_1(%arg0: i32) -> (i32, i32) {
    %c0_i32 = arith.constant 0 : i32
    %c0_i32_0 = arith.constant 0 : i32
    %c0_i32_1 = arith.constant 0 : i32
    return %c0_i32, %c0_i32_0 : i32, i32
  }
  func.func @transform_2(%arg0: i32) -> (i32, i32) {
    %c0_i32 = arith.constant 0 : i32
    %c0_i32_0 = arith.constant 0 : i32
    return %arg0, %c0_i32 : i32, i32
  }
  func.func @transform_3(%arg0: i32) -> (i32, i32) {
    %c0_i32 = arith.constant 0 : i32
    %c0_i32_0 = arith.constant 0 : i32
    return %arg0, %c0_i32 : i32, i32
  }
}

</mosaic_0001>

<llo_original>
// kernel: tpu_custom_call.1
$region0: #{tpu_custom_call.1}
  #allocation0 [shape = 'u32[]', space=smem, size = 0x4, offset = 0x4, fixed_abs, tag = 'smem constant byte address 0x4 - core index']
  #allocation1 [shape = 'u32[144,128]{1,0:T(1,128)}', space=vmem, size = 0x12000, scoped, tag = 'internal scratch']
  %s0 = inlined_call_operand.hbm [shape: f32[256,512], index: 0, kind: input, shape index: {}]
  %s1 = inlined_call_operand.hbm [shape: f32[512,128], index: 1, kind: input, shape index: {}]
  %s2 = inlined_call_operand.hbm [shape: f32[256,128], index: 2, kind: input, shape index: {}]
  %s3 = inlined_call_operand.hbm [shape: f32[256,128], index: 3, kind: output, shape index: {}]
  %s4 = sld [smem:[#allocation0]]
  $region57: #{tpu_custom_call.1} parent=0
    _
  %s6 = ssub.s32 1, %s4
  %s7 = scalar_select 0, %s6, %s4
  $region1: #{tpu_custom_call.1} parent=0
    #allocation2 [shape = 'u8[524288]{0}', space=vmem, size = 0x80000, scoped, tag = 'input window, operand 0']
    #allocation3 [shape = 's32[2]{0}', space=sflag, size = 0x8, scoped, tag = 'scoped memory for tpu_custom_call.1']
    #allocation4 [shape = 's32[2]{0}', space=sflag, size = 0x8, scoped, tag = 'scoped memory for tpu_custom_call.1']
    #allocation5 [shape = 'u8[262144]{0}', space=vmem, size = 0x40000, scoped, tag = 'input window, operand 1, single buffered']
    #allocation6 [shape = 's32[1]{0}', space=sflag, size = 0x4, scoped, tag = 'scoped memory for tpu_custom_call.1']
    #allocation7 [shape = 'u8[131072]{0}', space=vmem, size = 0x20000, scoped, tag = 'input window, operand 2']
    #allocation8 [shape = 'u8[131072]{0}', space=vmem, size = 0x20000, scoped, tag = 'output window, operand 0']
    %8 = vsyncpa [#allocation3], 0
    %s9 = scalar_lea.sflag [#allocation3], 1
    %10 = vsyncpa %s9, 0
    %11 = vsyncpa [#allocation6], 0
    %12 = vsyncpa [#allocation4], 0
    %s13 = scalar_lea.sflag [#allocation4], 1
    %14 = vsyncpa %s13, 0
    loop: start=0, step=1, limit=4
    $region2: #{tpu_custom_call.1} parent=1 // loop_pre_header
      _
    $region3: #{tpu_custom_call.1} parent=1 // loop_header
      %s16 = sphi 0, %s20
      %p17 = scmp.ge.s32.totalorder %s16, 4
      %s26 = sphi 0, %s28
      %s29 = sphi 0, %s26
      %s30 = sphi 0, %s29
      %s46 = sphi 0, %s30
      %s50 = sphi 0, %s50
      %s52 = sphi 0, %s50
      %s53 = sphi 0, %s52
      %s67 = sphi 0, %s53
      %s73 = sphi 0, %s75
      %s76 = sphi 0, %s73
      %s77 = sphi 0, %s76
      %s93 = sphi 0, %s77
      %s99 = sphi 0, %s101
      %s102 = sphi 0, %s99
      %s103 = sphi 0, %s102
      %s119 = sphi 0, %s103
    $region4: #{tpu_custom_call.1} parent=1 // loop_header_branch
      %19 = sbr.rel (%p17) target = $region8
    $region5: #{tpu_custom_call.1} parent=1 // loop_body
      %s21 = ssub.s32 %s16, 1
      %s22 = ssub.s32 %s16, 2
      %s23 = sadd.s32 %s16, 1
      %s24 = ssub.s32 %s16, %s23
      %p25 = scmp.eq.s32.totalorder %s24, 0
      %s27 = sadd.s32 %s26, 1
      %s28 = scalar_select %p25, %s26, %s27
      %p31 = pneg %p25
      %p32 = scmp.eq.s32.totalorder %s16, 1
      %p33 = por %p31, %p32
      %p34 = scmp.ne.s32.totalorder %s26, %s29
      %p35 = scmp.eq.s32.totalorder %s16, 0
      %p36 = por %p34, %p35
      %p37 = scmp.ne.s32.totalorder %s26, %s29
      %p38 = scmp.eq.s32.totalorder %s21, 1
      %p39 = por %p37, %p38
      %p40 = scmp.ne.s32.totalorder %s29, %s30
      %p41 = scmp.eq.s32.totalorder %s21, 0
      %p42 = por %p40, %p41
      %p43 = scmp.ne.s32.totalorder %s29, %s30
      %p44 = scmp.eq.s32.totalorder %s22, 1
      %p45 = por %p43, %p44
      %p47 = scmp.ne.s32.totalorder %s30, %s46
      %p48 = scmp.eq.s32.totalorder %s22, 0
      %p49 = por %p47, %p48
      %s51 = sadd.s32 %s50, 1
      %p54 = scmp.eq.s32.totalorder %s16, 1
      %p55 = scmp.ne.s32.totalorder %s50, %s52
      %p56 = scmp.eq.s32.totalorder %s16, 0
      %p57 = por %p55, %p56
      %p58 = scmp.ne.s32.totalorder %s50, %s52
      %p59 = scmp.eq.s32.totalorder %s21, 1
      %p60 = por %p58, %p59
      %p61 = scmp.ne.s32.totalorder %s52, %s53
      %p62 = scmp.eq.s32.totalorder %s21, 0
      %p63 = por %p61, %p62
      %p64 = scmp.ne.s32.totalorder %s52, %s53
      %p65 = scmp.eq.s32.totalorder %s22, 1
      %p66 = por %p64, %p65
      %p68 = scmp.ne.s32.totalorder %s53, %s67
      %p69 = scmp.eq.s32.totalorder %s22, 0
      %p70 = por %p68, %p69
      %s71 = ssub.s32 %s16, %s23
      %p72 = scmp.eq.s32.totalorder %s71, 0
      %s74 = sadd.s32 %s73, 1
      %s75 = scalar_select %p72, %s73, %s74
      %p78 = pneg %p72
      %p79 = scmp.eq.s32.totalorder %s16, 1
      %p80 = por %p78, %p79
      %p81 = scmp.ne.s32.totalorder %s73, %s76
      %p82 = scmp.eq.s32.totalorder %s16, 0
      %p83 = por %p81, %p82
      %p84 = scmp.ne.s32.totalorder %s73, %s76
      %p85 = scmp.eq.s32.totalorder %s21, 1
      %p86 = por %p84, %p85
      %p87 = scmp.ne.s32.totalorder %s76, %s77
      %p88 = scmp.eq.s32.totalorder %s21, 0
      %p89 = por %p87, %p88
      %p90 = scmp.ne.s32.totalorder %s76, %s77
      %p91 = scmp.eq.s32.totalorder %s22, 1
      %p92 = por %p90, %p91
      %p94 = scmp.ne.s32.totalorder %s77, %s93
      %p95 = scmp.eq.s32.totalorder %s22, 0
      %p96 = por %p94, %p95
      %s97 = ssub.s32 %s16, %s23
      %p98 = scmp.eq.s32.totalorder %s97, 0
      %s100 = sadd.s32 %s99, 1
      %s101 = scalar_select %p98, %s99, %s100
      %p104 = pneg %p98
      %p105 = scmp.eq.s32.totalorder %s16, 1
      %p106 = por %p104, %p105
      %p107 = scmp.ne.s32.totalorder %s99, %s102
      %p108 = scmp.eq.s32.totalorder %s16, 0
      %p109 = por %p107, %p108
      %p110 = scmp.ne.s32.totalorder %s99, %s102
      %p111 = scmp.eq.s32.totalorder %s21, 1
      %p112 = por %p110, %p111
      %p113 = scmp.ne.s32.totalorder %s102, %s103
      %p114 = scmp.eq.s32.totalorder %s21, 0
      %p115 = por %p113, %p114
      %p116 = scmp.ne.s32.totalorder %s102, %s103
      %p117 = scmp.eq.s32.totalorder %s22, 1
      %p118 = por %p116, %p117
      %p120 = scmp.ne.s32.totalorder %s103, %s119
      %p121 = scmp.eq.s32.totalorder %s22, 0
      %p122 = por %p120, %p121
      %p123 = scmp.le.s32.totalorder 1, %s16
      %p124 = scmp.lt.s32.totalorder %s16, 3
      %p125 = pnand %p123, %p124
      %p126 = pneg %p125
      // Predicated region
      $region9: #{tpu_custom_call.1} parent=5 // pred_check
        _
      $region10: #{tpu_custom_call.1} parent=5 // pred_check_branch
        %128 = sbr.rel (%p125) target = $region12
      $region11: #{tpu_custom_call.1} parent=5 // pred_region
        %s129 = ssub.s32 %s16, 1
        // Predicated region
        $region13: #{tpu_custom_call.1} parent=11 // pred_check
          %p130 = pneg %p63
        $region14: #{tpu_custom_call.1} parent=11 // pred_check_branch
          %132 = sbr.rel (%p130) target = $region16
        $region15: #{tpu_custom_call.1} parent=11 // pred_region
          %s134 = ssub.s32 8192, 8192
          %135 = vsyncadd [#allocation6], %s134
          %s136 = sshll.u32 [#allocation5], 4
          %s137 = int_to_ptr.vmem [resolvable:$true] %s136
          %142 = dma.hbm_to_vmem [thread:$0]  %s1, 8192, %s137, [#allocation6], 128, 128, 8
        $region16: #{tpu_custom_call.1} parent=11 // pred_fallthru
          _
      $region12: #{tpu_custom_call.1} parent=5 // pred_fallthru
        _
      %p143 = scmp.lt.s32.totalorder %s16, 2
      // Predicated region
      $region17: #{tpu_custom_call.1} parent=5 // pred_check
        %p144 = pneg %p143
      $region18: #{tpu_custom_call.1} parent=5 // pred_check_branch
        %146 = sbr.rel (%p144) target = $region20
      $region19: #{tpu_custom_call.1} parent=5 // pred_region
        // Predicated region
        $region21: #{tpu_custom_call.1} parent=19 // pred_check
          %p147 = pneg %p36
        $region22: #{tpu_custom_call.1} parent=19 // pred_check_branch
          %149 = sbr.rel (%p147) target = $region24
        $region23: #{tpu_custom_call.1} parent=19 // pred_region
          %s150 = sand.u32 %s16, 1
          %s151 = scalar_lea.sflag [#allocation3], %s150
          %s152 = sand.u32 %s26, 1
          %s153 = smul.addr %s152, 512
          %s154 = scalar_lea.vmem [#allocation2], %s153
          %s155 = smul.u32 16, %s16
          %s157 = ssub.s32 8192, 8192
          %158 = vsyncadd %s151, %s157
          %s159 = smul.addr %s155, 4
          %s160 = smul.addr %s159, 128
          %s161 = scalar_lea.hbm %s0, %s160
          %s162 = sshll.u32 %s154, 4
          %s163 = int_to_ptr.vmem [resolvable:$true] %s162
          %168 = dma.hbm_to_vmem [thread:$0]  %s161, 8192, %s163, %s151, 512, 512, 32
        $region24: #{tpu_custom_call.1} parent=19 // pred_fallthru
          _
        // Predicated region
        $region25: #{tpu_custom_call.1} parent=19 // pred_check
          %p169 = pneg %p83
        $region26: #{tpu_custom_call.1} parent=19 // pred_check_branch
          %171 = sbr.rel (%p169) target = $region28
        $region27: #{tpu_custom_call.1} parent=19 // pred_region
          %s172 = sand.u32 %s16, 1
          %s173 = scalar_lea.sflag [#allocation3], %s172
          %s174 = sand.u32 %s73, 1
          %s175 = smul.addr %s174, 128
          %s176 = scalar_lea.vmem [#allocation7], %s175
          %s177 = smul.u32 16, %s16
          %s179 = ssub.s32 2048, 2048
          %180 = vsyncadd %s173, %s179
          %s181 = smul.addr %s177, 128
          %s182 = scalar_lea.hbm %s2, %s181
          %s183 = sshll.u32 %s176, 4
          %s184 = int_to_ptr.vmem [resolvable:$true] %s183
          %189 = dma.hbm_to_vmem [thread:$0]  %s182, 2048, %s184, %s173, 128, 128, 8
        $region28: #{tpu_custom_call.1} parent=19 // pred_fallthru
          _
      $region20: #{tpu_custom_call.1} parent=5 // pred_fallthru
        _
      %p190 = scmp.le.s32.totalorder 1, %s16
      %p191 = scmp.lt.s32.totalorder %s16, 3
      %p192 = pnand %p190, %p191
      %p193 = pneg %p192
      // Predicated region
      $region29: #{tpu_custom_call.1} parent=5 // pred_check
        _
      $region30: #{tpu_custom_call.1} parent=5 // pred_check_branch
        %195 = sbr.rel (%p192) target = $region32
      $region31: #{tpu_custom_call.1} parent=5 // pred_region
        %s196 = ssub.s32 %s16, 1
        %s197 = sand.u32 %s21, 1
        %s198 = scalar_lea.sflag [#allocation3], %s197
        %s199 = sand.u32 %s29, 1
        %s200 = smul.addr %s199, 512
        %s201 = scalar_lea.vmem [#allocation2], %s200
        // Predicated region
        $region33: #{tpu_custom_call.1} parent=31 // pred_check
          %p202 = pneg %p42
        $region34: #{tpu_custom_call.1} parent=31 // pred_check_branch
          %204 = sbr.rel (%p202) target = $region36
        $region35: #{tpu_custom_call.1} parent=31 // pred_region
          %205 = dma.done %s198, 8192
        $region36: #{tpu_custom_call.1} parent=31 // pred_fallthru
          _
        // Predicated region
        $region37: #{tpu_custom_call.1} parent=31 // pred_check
          %p206 = pneg %p63
        $region38: #{tpu_custom_call.1} parent=31 // pred_check_branch
          %208 = sbr.rel (%p206) target = $region40
        $region39: #{tpu_custom_call.1} parent=31 // pred_region
          %209 = dma.done [#allocation6], 8192
        $region40: #{tpu_custom_call.1} parent=31 // pred_fallthru
          _
        %s210 = sand.u32 %s21, 1
        %s211 = scalar_lea.sflag [#allocation3], %s210
        %s212 = sand.u32 %s76, 1
        %s213 = smul.addr %s212, 128
        %s214 = scalar_lea.vmem [#allocation7], %s213
        // Predicated region
        $region41: #{tpu_custom_call.1} parent=31 // pred_check
          %p215 = pneg %p89
        $region42: #{tpu_custom_call.1} parent=31 // pred_check_branch
          %217 = sbr.rel (%p215) target = $region44
        $region43: #{tpu_custom_call.1} parent=31 // pred_region
          %218 = dma.done %s211, 2048
        $region44: #{tpu_custom_call.1} parent=31 // pred_fallthru
          _
        %s219 = sand.u32 %s21, 1
        %s220 = scalar_lea.sflag [#allocation3], %s219
        %s221 = sand.u32 %s29, 1
        %s222 = smul.addr %s221, 512
        %s223 = scalar_lea.vmem [#allocation2], %s222
        %p224 = pneg %p42
        %p225 = pneg %p39
        %p226 = pneg %p63
        %p227 = pneg %p60
        %s228 = sand.u32 %s21, 1
        %s229 = scalar_lea.sflag [#allocation3], %s228
        %s230 = sand.u32 %s76, 1
        %s231 = smul.addr %s230, 128
        %s232 = scalar_lea.vmem [#allocation7], %s231
        %p233 = pneg %p89
        %p234 = pneg %p86
        %p235 = pneg %p115
        %p236 = pneg %p112
        %s237 = sand.u32 %s102, 1
        %s238 = scalar_lea.sflag [#allocation4], %s237
        %s239 = sand.u32 %s102, 1
        %s240 = smul.addr %s239, 128
        %s241 = scalar_lea.vmem [#allocation8], %s240
        %s242 = smul.u32 16, %s21
        %s243 = smul.u32 16, %s21
        %s244 = smul.u32 16, %s21
        %v245 = vld [vmem:[%s201] sm:$0xff]
        %v246 = vld [vmem:[%s201 + $0x8] sm:$0xff]
        %v247 = vld [vmem:[%s201 + $0x10] sm:$0xff]
        %v248 = vld [vmem:[%s201 + $0x18] sm:$0xff]
        %v249 = vld [vmem:[%s201 + $0x20] sm:$0xff]
        %v250 = vld [vmem:[%s201 + $0x28] sm:$0xff]
        %v251 = vld [vmem:[%s201 + $0x30] sm:$0xff]
        %v252 = vld [vmem:[%s201 + $0x38] sm:$0xff]
        %v253 = vld [vmem:[%s201 + $0x40] sm:$0xff]
        %v254 = vld [vmem:[%s201 + $0x48] sm:$0xff]
        %v255 = vld [vmem:[%s201 + $0x50] sm:$0xff]
        %v256 = vld [vmem:[%s201 + $0x58] sm:$0xff]
        %v257 = vld [vmem:[%s201 + $0x60] sm:$0xff]
        %v258 = vld [vmem:[%s201 + $0x68] sm:$0xff]
        %v259 = vld [vmem:[%s201 + $0x70] sm:$0xff]
        %v260 = vld [vmem:[%s201 + $0x78] sm:$0xff]
        %v261 = vld [vmem:[%s201 + $0x80] sm:$0xff]
        %v262 = vld [vmem:[%s201 + $0x88] sm:$0xff]
        %v263 = vld [vmem:[%s201 + $0x90] sm:$0xff]
        %v264 = vld [vmem:[%s201 + $0x98] sm:$0xff]
        %v265 = vld [vmem:[%s201 + $0xa0] sm:$0xff]
        %v266 = vld [vmem:[%s201 + $0xa8] sm:$0xff]
        %v267 = vld [vmem:[%s201 + $0xb0] sm:$0xff]
        %v268 = vld [vmem:[%s201 + $0xb8] sm:$0xff]
        %v269 = vld [vmem:[%s201 + $0xc0] sm:$0xff]
        %v270 = vld [vmem:[%s201 + $0xc8] sm:$0xff]
        %v271 = vld [vmem:[%s201 + $0xd0] sm:$0xff]
        %v272 = vld [vmem:[%s201 + $0xd8] sm:$0xff]
        %v273 = vld [vmem:[%s201 + $0xe0] sm:$0xff]
        %v274 = vld [vmem:[%s201 + $0xe8] sm:$0xff]
        %v275 = vld [vmem:[%s201 + $0xf0] sm:$0xff]
        %v276 = vld [vmem:[%s201 + $0xf8] sm:$0xff]
        %v277 = vld [vmem:[%s201 + $0x100] sm:$0xff]
        %v278 = vld [vmem:[%s201 + $0x108] sm:$0xff]
        %v279 = vld [vmem:[%s201 + $0x110] sm:$0xff]
        %v280 = vld [vmem:[%s201 + $0x118] sm:$0xff]
        %v281 = vld [vmem:[%s201 + $0x120] sm:$0xff]
        %v282 = vld [vmem:[%s201 + $0x128] sm:$0xff]
        %v283 = vld [vmem:[%s201 + $0x130] sm:$0xff]
        %v284 = vld [vmem:[%s201 + $0x138] sm:$0xff]
        %v285 = vld [vmem:[%s201 + $0x140] sm:$0xff]
        %v286 = vld [vmem:[%s201 + $0x148] sm:$0xff]
        %v287 = vld [vmem:[%s201 + $0x150] sm:$0xff]
        %v288 = vld [vmem:[%s201 + $0x158] sm:$0xff]
        %v289 = vld [vmem:[%s201 + $0x160] sm:$0xff]
        %v290 = vld [vmem:[%s201 + $0x168] sm:$0xff]
        %v291 = vld [vmem:[%s201 + $0x170] sm:$0xff]
        %v292 = vld [vmem:[%s201 + $0x178] sm:$0xff]
        %v293 = vld [vmem:[%s201 + $0x180] sm:$0xff]
        %v294 = vld [vmem:[%s201 + $0x188] sm:$0xff]
        %v295 = vld [vmem:[%s201 + $0x190] sm:$0xff]
        %v296 = vld [vmem:[%s201 + $0x198] sm:$0xff]
        %v297 = vld [vmem:[%s201 + $0x1a0] sm:$0xff]
        %v298 = vld [vmem:[%s201 + $0x1a8] sm:$0xff]
        %v299 = vld [vmem:[%s201 + $0x1b0] sm:$0xff]
        %v300 = vld [vmem:[%s201 + $0x1b8] sm:$0xff]
        %v301 = vld [vmem:[%s201 + $0x1c0] sm:$0xff]
        %v302 = vld [vmem:[%s201 + $0x1c8] sm:$0xff]
        %v303 = vld [vmem:[%s201 + $0x1d0] sm:$0xff]
        %v304 = vld [vmem:[%s201 + $0x1d8] sm:$0xff]
        %v305 = vld [vmem:[%s201 + $0x1e0] sm:$0xff]
        %v306 = vld [vmem:[%s201 + $0x1e8] sm:$0xff]
        %v307 = vld [vmem:[%s201 + $0x1f0] sm:$0xff]
        %v308 = vld [vmem:[%s201 + $0x1f8] sm:$0xff]
        %v309 = vld [vmem:[#allocation5] sm:$0xff]
        %v310 = vld [vmem:[#allocation5 + $0x8] sm:$0xff]
        %v311 = vld [vmem:[#allocation5 + $0x10] sm:$0xff]
        %v312 = vld [vmem:[#allocation5 + $0x18] sm:$0xff]
        %v313 = vld [vmem:[#allocation5 + $0x20] sm:$0xff]
        %v314 = vld [vmem:[#allocation5 + $0x28] sm:$0xff]
        %v315 = vld [vmem:[#allocation5 + $0x30] sm:$0xff]
        %v316 = vld [vmem:[#allocation5 + $0x38] sm:$0xff]
        %v317 = vld [vmem:[#allocation5 + $0x40] sm:$0xff]
        %v318 = vld [vmem:[#allocation5 + $0x48] sm:$0xff]
        %v319 = vld [vmem:[#allocation5 + $0x50] sm:$0xff]
        %v320 = vld [vmem:[#allocation5 + $0x58] sm:$0xff]
        %v321 = vld [vmem:[#allocation5 + $0x60] sm:$0xff]
        %v322 = vld [vmem:[#allocation5 + $0x68] sm:$0xff]
        %v323 = vld [vmem:[#allocation5 + $0x70] sm:$0xff]
        %v324 = vld [vmem:[#allocation5 + $0x78] sm:$0xff]
        %v325 = vld [vmem:[#allocation5 + $0x80] sm:$0xff]
        %v326 = vld [vmem:[#allocation5 + $0x88] sm:$0xff]
        %v327 = vld [vmem:[#allocation5 + $0x90] sm:$0xff]
        %v328 = vld [vmem:[#allocation5 + $0x98] sm:$0xff]
        %v329 = vld [vmem:[#allocation5 + $0xa0] sm:$0xff]
        %v330 = vld [vmem:[#allocation5 + $0xa8] sm:$0xff]
        %v331 = vld [vmem:[#allocation5 + $0xb0] sm:$0xff]
        %v332 = vld [vmem:[#allocation5 + $0xb8] sm:$0xff]
        %v333 = vld [vmem:[#allocation5 + $0xc0] sm:$0xff]
        %v334 = vld [vmem:[#allocation5 + $0xc8] sm:$0xff]
        %v335 = vld [vmem:[#allocation5 + $0xd0] sm:$0xff]
        %v336 = vld [vmem:[#allocation5 + $0xd8] sm:$0xff]
        %v337 = vld [vmem:[#allocation5 + $0xe0] sm:$0xff]
        %v338 = vld [vmem:[#allocation5 + $0xe8] sm:$0xff]
        %v339 = vld [vmem:[#allocation5 + $0xf0] sm:$0xff]
        %v340 = vld [vmem:[#allocation5 + $0xf8] sm:$0xff]
        %v341 = vld [vmem:[#allocation5 + $0x100] sm:$0xff]
        %v342 = vld [vmem:[#allocation5 + $0x108] sm:$0xff]
        %v343 = vld [vmem:[#allocation5 + $0x110] sm:$0xff]
        %v344 = vld [vmem:[#allocation5 + $0x118] sm:$0xff]
        %v345 = vld [vmem:[#allocation5 + $0x120] sm:$0xff]
        %v346 = vld [vmem:[#allocation5 + $0x128] sm:$0xff]
        %v347 = vld [vmem:[#allocation5 + $0x130] sm:$0xff]
        %v348 = vld [vmem:[#allocation5 + $0x138] sm:$0xff]
        %v349 = vld [vmem:[#allocation5 + $0x140] sm:$0xff]
        %v350 = vld [vmem:[#allocation5 + $0x148] sm:$0xff]
        %v351 = vld [vmem:[#allocation5 + $0x150] sm:$0xff]
        %v352 = vld [vmem:[#allocation5 + $0x158] sm:$0xff]
        %v353 = vld [vmem:[#allocation5 + $0x160] sm:$0xff]
        %v354 = vld [vmem:[#allocation5 + $0x168] sm:$0xff]
        %v355 = vld [vmem:[#allocation5 + $0x170] sm:$0xff]
        %v356 = vld [vmem:[#allocation5 + $0x178] sm:$0xff]
        %v357 = vld [vmem:[#allocation5 + $0x180] sm:$0xff]
        %v358 = vld [vmem:[#allocation5 + $0x188] sm:$0xff]
        %v359 = vld [vmem:[#allocation5 + $0x190] sm:$0xff]
        %v360 = vld [vmem:[#allocation5 + $0x198] sm:$0xff]
        %v361 = vld [vmem:[#allocation5 + $0x1a0] sm:$0xff]
        %v362 = vld [vmem:[#allocation5 + $0x1a8] sm:$0xff]
        %v363 = vld [vmem:[#allocation5 + $0x1b0] sm:$0xff]
        %v364 = vld [vmem:[#allocation5 + $0x1b8] sm:$0xff]
        %v365 = vld [vmem:[#allocation5 + $0x1c0] sm:$0xff]
        %v366 = vld [vmem:[#allocation5 + $0x1c8] sm:$0xff]
        %v367 = vld [vmem:[#allocation5 + $0x1d0] sm:$0xff]
        %v368 = vld [vmem:[#allocation5 + $0x1d8] sm:$0xff]
        %v369 = vld [vmem:[#allocation5 + $0x1e0] sm:$0xff]
        %v370 = vld [vmem:[#allocation5 + $0x1e8] sm:$0xff]
        %v371 = vld [vmem:[#allocation5 + $0x1f0] sm:$0xff]
        %v372 = vld [vmem:[#allocation5 + $0x1f8] sm:$0xff]
        %v373 = vld [vmem:[%s214] sm:$0xff]
        %v374 = vld [vmem:[%s214 + $0x8] sm:$0xff]
        %v375 = vld [vmem:[%s214 + $0x10] sm:$0xff]
        %v376 = vld [vmem:[%s214 + $0x18] sm:$0xff]
        %v377 = vld [vmem:[%s214 + $0x20] sm:$0xff]
        %v378 = vld [vmem:[%s214 + $0x28] sm:$0xff]
        %v379 = vld [vmem:[%s214 + $0x30] sm:$0xff]
        %v380 = vld [vmem:[%s214 + $0x38] sm:$0xff]
        %v381 = vld [vmem:[%s214 + $0x40] sm:$0xff]
        %v382 = vld [vmem:[%s214 + $0x48] sm:$0xff]
        %v383 = vld [vmem:[%s214 + $0x50] sm:$0xff]
        %v384 = vld [vmem:[%s214 + $0x58] sm:$0xff]
        %v385 = vld [vmem:[%s214 + $0x60] sm:$0xff]
        %v386 = vld [vmem:[%s214 + $0x68] sm:$0xff]
        %v387 = vld [vmem:[%s214 + $0x70] sm:$0xff]
        %v388 = vld [vmem:[%s214 + $0x78] sm:$0xff]
        %389 = vmatprep.subr.mxu0 0.0
        %390 = vmatpush1.msra.mxu0 %v309
        %391 = vmatprep.subr.mxu0 0.0
        %392 = vmatpush1.msra.mxu0 %v310
        %393 = vmatprep.subr.mxu0 0.0
        %394 = vmatpush1.msra.mxu0 %v311
        %395 = vmatprep.subr.mxu0 0.0
        %396 = vmatpush1.msra.mxu0 %v312
        %397 = vmatprep.subr.mxu0 0.0
        %398 = vmatpush1.msra.mxu0 %v313
        %399 = vmatprep.subr.mxu0 0.0
        %400 = vmatpush1.msra.mxu0 %v314
        %401 = vmatprep.subr.mxu0 0.0
        %402 = vmatpush1.msra.mxu0 %v315
        %403 = vmatprep.subr.mxu0 0.0
        %404 = vmatpush1.msra.mxu0 %v316
        %405 = vmatprep.subr.mxu0 0.0
        %406 = vmatpush1.msra.mxu0 %v317
        %407 = vmatprep.subr.mxu0 0.0
        %408 = vmatpush1.msra.mxu0 %v318
        %409 = vmatprep.subr.mxu0 0.0
        %410 = vmatpush1.msra.mxu0 %v319
        %411 = vmatprep.subr.mxu0 0.0
        %412 = vmatpush1.msra.mxu0 %v320
        %413 = vmatprep.subr.mxu0 0.0
        %414 = vmatpush1.msra.mxu0 %v321
        %415 = vmatprep.subr.mxu0 0.0
        %416 = vmatpush1.msra.mxu0 %v322
        %417 = vmatprep.subr.mxu0 0.0
        %418 = vmatpush1.msra.mxu0 %v323
        %419 = vmatprep.subr.mxu0 0.0
        %420 = vmatpush1.msra.mxu0 %v324
        %421 = vmatprep.subr.mxu0 0.0
        %422 = vmatpush1.msra.mxu0 %v325
        %423 = vmatprep.subr.mxu0 0.0
        %424 = vmatpush1.msra.mxu0 %v326
        %425 = vmatprep.subr.mxu0 0.0
        %426 = vmatpush1.msra.mxu0 %v327
        %427 = vmatprep.subr.mxu0 0.0
        %428 = vmatpush1.msra.mxu0 %v328
        %429 = vmatprep.subr.mxu0 0.0
        %430 = vmatpush1.msra.mxu0 %v329
        %431 = vmatprep.subr.mxu0 0.0
        %432 = vmatpush1.msra.mxu0 %v330
        %433 = vmatprep.subr.mxu0 0.0
        %434 = vmatpush1.msra.mxu0 %v331
        %435 = vmatprep.subr.mxu0 0.0
        %436 = vmatpush1.msra.mxu0 %v332
        %437 = vmatprep.subr.mxu0 0.0
        %438 = vmatpush1.msra.mxu0 %v333
        %439 = vmatprep.subr.mxu0 0.0
        %440 = vmatpush1.msra.mxu0 %v334
        %441 = vmatprep.subr.mxu0 0.0
        %442 = vmatpush1.msra.mxu0 %v335
        %443 = vmatprep.subr.mxu0 0.0
        %444 = vmatpush1.msra.mxu0 %v336
        %445 = vmatprep.subr.mxu0 0.0
        %446 = vmatpush1.msra.mxu0 %v337
        %447 = vmatprep.subr.mxu0 0.0
        %448 = vmatpush1.msra.mxu0 %v338
        %449 = vmatprep.subr.mxu0 0.0
        %450 = vmatpush1.msra.mxu0 %v339
        %451 = vmatprep.subr.mxu0 0.0
        %452 = vmatpush1.msra.mxu0 %v340
        %453 = vmatprep.mubr.f32.mxu0 %v246
        %454 = vmatmul.mubr.f32.gmra.mrb[0].mxu0 %v245
        %v455 = vpop.f32.mrb[0].mxu0
        %v456 = vadd.f32 %v373, %v455
        %v457 = vpop.f32.mrb[0].mxu0
        %458 = vmatprep.mubr.f32.mxu0 %v250
        %459 = vmatmul.mubr.f32.gmra.mrb[0].mxu0 %v249
        %v460 = vpop.f32.mrb[0].mxu0
        %v461 = vadd.f32 %v374, %v460
        %v462 = vpop.f32.mrb[0].mxu0
        %463 = vmatprep.mubr.f32.mxu0 %v254
        %464 = vmatmul.mubr.f32.gmra.mrb[0].mxu0 %v253
        %v465 = vpop.f32.mrb[0].mxu0
        %v466 = vadd.f32 %v375, %v465
        %v467 = vpop.f32.mrb[0].mxu0
        %468 = vmatprep.mubr.f32.mxu0 %v258
        %469 = vmatmul.mubr.f32.gmra.mrb[0].mxu0 %v257
        %v470 = vpop.f32.mrb[0].mxu0
        %v471 = vadd.f32 %v376, %v470
        %v472 = vpop.f32.mrb[0].mxu0
        %473 = vmatprep.mubr.f32.mxu0 %v262
        %474 = vmatmul.mubr.f32.gmra.mrb[0].mxu0 %v261
        %v475 = vpop.f32.mrb[0].mxu0
        %v476 = vadd.f32 %v377, %v475
        %v477 = vpop.f32.mrb[0].mxu0
        %478 = vmatprep.mubr.f32.mxu0 %v266
        %479 = vmatmul.mubr.f32.gmra.mrb[0].mxu0 %v265
        %v480 = vpop.f32.mrb[0].mxu0
        %v481 = vadd.f32 %v378, %v480
        %v482 = vpop.f32.mrb[0].mxu0
        %483 = vmatprep.mubr.f32.mxu0 %v270
        %484 = vmatmul.mubr.f32.gmra.mrb[0].mxu0 %v269
        %v485 = vpop.f32.mrb[0].mxu0
        %v486 = vadd.f32 %v379, %v485
        %v487 = vpop.f32.mrb[0].mxu0
        %488 = vmatprep.mubr.f32.mxu0 %v274
        %489 = vmatmul.mubr.f32.gmra.mrb[0].mxu0 %v273
        %v490 = vpop.f32.mrb[0].mxu0
        %v491 = vadd.f32 %v380, %v490
        %v492 = vpop.f32.mrb[0].mxu0
        %493 = vmatprep.mubr.f32.mxu0 %v278
        %494 = vmatmul.mubr.f32.gmra.mrb[0].mxu0 %v277
        %v495 = vpop.f32.mrb[0].mxu0
        %v496 = vadd.f32 %v381, %v495
        %v497 = vpop.f32.mrb[0].mxu0
        %498 = vmatprep.mubr.f32.mxu0 %v282
        %499 = vmatmul.mubr.f32.gmra.mrb[0].mxu0 %v281
        %v500 = vpop.f32.mrb[0].mxu0
        %v501 = vadd.f32 %v382, %v500
        %v502 = vpop.f32.mrb[0].mxu0
        %503 = vmatprep.mubr.f32.mxu0 %v286
        %504 = vmatmul.mubr.f32.gmra.mrb[0].mxu0 %v285
        %v505 = vpop.f32.mrb[0].mxu0
        %v506 = vadd.f32 %v383, %v505
        %v507 = vpop.f32.mrb[0].mxu0
        %508 = vmatprep.mubr.f32.mxu0 %v290
        %509 = vmatmul.mubr.f32.gmra.mrb[0].mxu0 %v289
        %v510 = vpop.f32.mrb[0].mxu0
        %v511 = vadd.f32 %v384, %v510
        %v512 = vpop.f32.mrb[0].mxu0
        %513 = vmatprep.mubr.f32.mxu0 %v294
        %514 = vmatmul.mubr.f32.gmra.mrb[0].mxu0 %v293
        %v515 = vpop.f32.mrb[0].mxu0
        %v516 = vadd.f32 %v385, %v515
        %v517 = vpop.f32.mrb[0].mxu0
        %518 = vmatprep.mubr.f32.mxu0 %v298
        %519 = vmatmul.mubr.f32.gmra.mrb[0].mxu0 %v297
        %v520 = vpop.f32.mrb[0].mxu0
        %v521 = vadd.f32 %v386, %v520
        %v522 = vpop.f32.mrb[0].mxu0
        %523 = vmatprep.mubr.f32.mxu0 %v302
        %524 = vmatmul.mubr.f32.gmra.mrb[0].mxu0 %v301
        %v525 = vpop.f32.mrb[0].mxu0
        %v526 = vadd.f32 %v387, %v525
        %v527 = vpop.f32.mrb[0].mxu0
        %528 = vmatprep.mubr.f32.mxu0 %v306
        %529 = vmatmul.mubr.f32.gmra.mrb[0].mxu0 %v305
        %v530 = vpop.f32.mrb[0].mxu0
        %v531 = vadd.f32 %v388, %v530
        %v532 = vpop.f32.mrb[0].mxu0
        %533 = vdwg.mxu0
        %534 = vmatprep.subr.mxu0 0.0
        %535 = vmatpush1.msra.mxu0 %v341
        %536 = vmatprep.subr.mxu0 0.0
        %537 = vmatpush1.msra.mxu0 %v342
        %538 = vmatprep.subr.mxu0 0.0
        %539 = vmatpush1.msra.mxu0 %v343
        %540 = vmatprep.subr.mxu0 0.0
        %541 = vmatpush1.msra.mxu0 %v344
        %542 = vmatprep.subr.mxu0 0.0
        %543 = vmatpush1.msra.mxu0 %v345
        %544 = vmatprep.subr.mxu0 0.0
        %545 = vmatpush1.msra.mxu0 %v346
        %546 = vmatprep.subr.mxu0 0.0
        %547 = vmatpush1.msra.mxu0 %v347
        %548 = vmatprep.subr.mxu0 0.0
        %549 = vmatpush1.msra.mxu0 %v348
        %550 = vmatprep.subr.mxu0 0.0
        %551 = vmatpush1.msra.mxu0 %v349
        %552 = vmatprep.subr.mxu0 0.0
        %553 = vmatpush1.msra.mxu0 %v350
        %554 = vmatprep.subr.mxu0 0.0
        %555 = vmatpush1.msra.mxu0 %v351
        %556 = vmatprep.subr.mxu0 0.0
        %557 = vmatpush1.msra.mxu0 %v352
        %558 = vmatprep.subr.mxu0 0.0
        %559 = vmatpush1.msra.mxu0 %v353
        %560 = vmatprep.subr.mxu0 0.0
        %561 = vmatpush1.msra.mxu0 %v354
        %562 = vmatprep.subr.mxu0 0.0
        %563 = vmatpush1.msra.mxu0 %v355
        %564 = vmatprep.subr.mxu0 0.0
        %565 = vmatpush1.msra.mxu0 %v356
        %566 = vmatprep.subr.mxu0 0.0
        %567 = vmatpush1.msra.mxu0 %v357
        %568 = vmatprep.subr.mxu0 0.0
        %569 = vmatpush1.msra.mxu0 %v358
        %570 = vmatprep.subr.mxu0 0.0
        %571 = vmatpush1.msra.mxu0 %v359
        %572 = vmatprep.subr.mxu0 0.0
        %573 = vmatpush1.msra.mxu0 %v360
        %574 = vmatprep.subr.mxu0 0.0
        %575 = vmatpush1.msra.mxu0 %v361
        %576 = vmatprep.subr.mxu0 0.0
        %577 = vmatpush1.msra.mxu0 %v362
        %578 = vmatprep.subr.mxu0 0.0
        %579 = vmatpush1.msra.mxu0 %v363
        %580 = vmatprep.subr.mxu0 0.0
        %581 = vmatpush1.msra.mxu0 %v364
        %582 = vmatprep.subr.mxu0 0.0
        %583 = vmatpush1.msra.mxu0 %v365
        %584 = vmatprep.subr.mxu0 0.0
        %585 = vmatpush1.msra.mxu0 %v366
        %586 = vmatprep.subr.mxu0 0.0
        %587 = vmatpush1.msra.mxu0 %v367
        %588 = vmatprep.subr.mxu0 0.0
        %589 = vmatpush1.msra.mxu0 %v368
        %590 = vmatprep.subr.mxu0 0.0
        %591 = vmatpush1.msra.mxu0 %v369
        %592 = vmatprep.subr.mxu0 0.0
        %593 = vmatpush1.msra.mxu0 %v370
        %594 = vmatprep.subr.mxu0 0.0
        %595 = vmatpush1.msra.mxu0 %v371
        %596 = vmatprep.subr.mxu0 0.0
        %597 = vmatpush1.msra.mxu0 %v372
        %598 = vmatprep.mubr.f32.mxu0 %v248
        %599 = vmatmul.mubr.f32.gmra.mrb[0].mxu0 %v247
        %v600 = vpop.f32.mrb[0].mxu0
        %v601 = vadd.f32 %v456, %v600
        %v602 = vpop.f32.mrb[0].mxu0
        %603 = vmatprep.mubr.f32.mxu0 %v252
        %604 = vmatmul.mubr.f32.gmra.mrb[0].mxu0 %v251
        %v605 = vpop.f32.mrb[0].mxu0
        %v606 = vadd.f32 %v461, %v605
        %v607 = vpop.f32.mrb[0].mxu0
        %608 = vmatprep.mubr.f32.mxu0 %v256
        %609 = vmatmul.mubr.f32.gmra.mrb[0].mxu0 %v255
        %v610 = vpop.f32.mrb[0].mxu0
        %v611 = vadd.f32 %v466, %v610
        %v612 = vpop.f32.mrb[0].mxu0
        %613 = vmatprep.mubr.f32.mxu0 %v260
        %614 = vmatmul.mubr.f32.gmra.mrb[0].mxu0 %v259
        %v615 = vpop.f32.mrb[0].mxu0
        %v616 = vadd.f32 %v471, %v615
        %v617 = vpop.f32.mrb[0].mxu0
        %618 = vmatprep.mubr.f32.mxu0 %v264
        %619 = vmatmul.mubr.f32.gmra.mrb[0].mxu0 %v263
        %v620 = vpop.f32.mrb[0].mxu0
        %v621 = vadd.f32 %v476, %v620
        %v622 = vpop.f32.mrb[0].mxu0
        %623 = vmatprep.mubr.f32.mxu0 %v268
        %624 = vmatmul.mubr.f32.gmra.mrb[0].mxu0 %v267
        %v625 = vpop.f32.mrb[0].mxu0
        %v626 = vadd.f32 %v481, %v625
        %v627 = vpop.f32.mrb[0].mxu0
        %628 = vmatprep.mubr.f32.mxu0 %v272
        %629 = vmatmul.mubr.f32.gmra.mrb[0].mxu0 %v271
        %v630 = vpop.f32.mrb[0].mxu0
        %v631 = vadd.f32 %v486, %v630
        %v632 = vpop.f32.mrb[0].mxu0
        %633 = vmatprep.mubr.f32.mxu0 %v276
        %634 = vmatmul.mubr.f32.gmra.mrb[0].mxu0 %v275
        %v635 = vpop.f32.mrb[0].mxu0
        %v636 = vadd.f32 %v491, %v635
        %v637 = vpop.f32.mrb[0].mxu0
        %638 = vmatprep.mubr.f32.mxu0 %v280
        %639 = vmatmul.mubr.f32.gmra.mrb[0].mxu0 %v279
        %v640 = vpop.f32.mrb[0].mxu0
        %v641 = vadd.f32 %v496, %v640
        %v642 = vpop.f32.mrb[0].mxu0
        %643 = vmatprep.mubr.f32.mxu0 %v284
        %644 = vmatmul.mubr.f32.gmra.mrb[0].mxu0 %v283
        %v645 = vpop.f32.mrb[0].mxu0
        %v646 = vadd.f32 %v501, %v645
        %v647 = vpop.f32.mrb[0].mxu0
        %648 = vmatprep.mubr.f32.mxu0 %v288
        %649 = vmatmul.mubr.f32.gmra.mrb[0].mxu0 %v287
        %v650 = vpop.f32.mrb[0].mxu0
        %v651 = vadd.f32 %v506, %v650
        %v652 = vpop.f32.mrb[0].mxu0
        %653 = vmatprep.mubr.f32.mxu0 %v292
        %654 = vmatmul.mubr.f32.gmra.mrb[0].mxu0 %v291
        %v655 = vpop.f32.mrb[0].mxu0
        %v656 = vadd.f32 %v511, %v655
        %v657 = vpop.f32.mrb[0].mxu0
        %658 = vmatprep.mubr.f32.mxu0 %v296
        %659 = vmatmul.mubr.f32.gmra.mrb[0].mxu0 %v295
        %v660 = vpop.f32.mrb[0].mxu0
        %v661 = vadd.f32 %v516, %v660
        %v662 = vpop.f32.mrb[0].mxu0
        %663 = vmatprep.mubr.f32.mxu0 %v300
        %664 = vmatmul.mubr.f32.gmra.mrb[0].mxu0 %v299
        %v665 = vpop.f32.mrb[0].mxu0
        %v666 = vadd.f32 %v521, %v665
        %v667 = vpop.f32.mrb[0].mxu0
        %668 = vmatprep.mubr.f32.mxu0 %v304
        %669 = vmatmul.mubr.f32.gmra.mrb[0].mxu0 %v303
        %v670 = vpop.f32.mrb[0].mxu0
        %v671 = vadd.f32 %v526, %v670
        %v672 = vpop.f32.mrb[0].mxu0
        %673 = vmatprep.mubr.f32.mxu0 %v308
        %674 = vmatmul.mubr.f32.gmra.mrb[0].mxu0 %v307
        %v675 = vpop.f32.mrb[0].mxu0
        %v676 = vadd.f32 %v531, %v675
        %v677 = vpop.f32.mrb[0].mxu0
        %678 = vdwg.mxu0
        %679 = vst [vmem:[%s241] sm:$0xff] %v601
        %680 = vst [vmem:[%s241 + $0x8] sm:$0xff] %v606
        %681 = vst [vmem:[%s241 + $0x10] sm:$0xff] %v611
        %682 = vst [vmem:[%s241 + $0x18] sm:$0xff] %v616
        %683 = vst [vmem:[%s241 + $0x20] sm:$0xff] %v621
        %684 = vst [vmem:[%s241 + $0x28] sm:$0xff] %v626
        %685 = vst [vmem:[%s241 + $0x30] sm:$0xff] %v631
        %686 = vst [vmem:[%s241 + $0x38] sm:$0xff] %v636
        %687 = vst [vmem:[%s241 + $0x40] sm:$0xff] %v641
        %688 = vst [vmem:[%s241 + $0x48] sm:$0xff] %v646
        %689 = vst [vmem:[%s241 + $0x50] sm:$0xff] %v651
        %690 = vst [vmem:[%s241 + $0x58] sm:$0xff] %v656
        %691 = vst [vmem:[%s241 + $0x60] sm:$0xff] %v661
        %692 = vst [vmem:[%s241 + $0x68] sm:$0xff] %v666
        %693 = vst [vmem:[%s241 + $0x70] sm:$0xff] %v671
        %694 = vst [vmem:[%s241 + $0x78] sm:$0xff] %v676
        %s695 = sand.u32 %s102, 1
        %s696 = scalar_lea.sflag [#allocation4], %s695
        %s697 = sand.u32 %s102, 1
        %s698 = smul.addr %s697, 128
        %s699 = scalar_lea.vmem [#allocation8], %s698
        // Predicated region
        $region45: #{tpu_custom_call.1} parent=31 // pred_check
          %p700 = pneg %p112
        $region46: #{tpu_custom_call.1} parent=31 // pred_check_branch
          %702 = sbr.rel (%p700) target = $region48
        $region47: #{tpu_custom_call.1} parent=31 // pred_region
          %s703 = smul.u32 16, %s21
          %s705 = ssub.s32 2048, 2048
          %706 = vsyncadd %s696, %s705
          %s707 = smul.addr %s703, 128
          %s708 = scalar_lea.hbm %s3, %s707
          %s709 = sshll.u32 %s699, 4
          %s710 = int_to_ptr.vmem [resolvable:$true] %s709
          %715 = dma.vmem_to_hbm [thread:$0]  %s710, 2048, %s708, %s696, 128, 128, 8
        $region48: #{tpu_custom_call.1} parent=31 // pred_fallthru
          _
      $region32: #{tpu_custom_call.1} parent=5 // pred_fallthru
        _
      %p716 = scmp.le.s32.totalorder 2, %s16
      // Predicated region
      $region49: #{tpu_custom_call.1} parent=5 // pred_check
        %p717 = pneg %p716
      $region50: #{tpu_custom_call.1} parent=5 // pred_check_branch
        %719 = sbr.rel (%p717) target = $region52
      $region51: #{tpu_custom_call.1} parent=5 // pred_region
        %s720 = ssub.s32 %s16, 2
        // Predicated region
        $region53: #{tpu_custom_call.1} parent=51 // pred_check
          %p721 = pneg %p118
        $region54: #{tpu_custom_call.1} parent=51 // pred_check_branch
          %723 = sbr.rel (%p721) target = $region56
        $region55: #{tpu_custom_call.1} parent=51 // pred_region
          %s724 = sand.u32 %s103, 1
          %s725 = scalar_lea.sflag [#allocation4], %s724
          %s726 = sand.u32 %s103, 1
          %s727 = smul.addr %s726, 128
          %s728 = scalar_lea.vmem [#allocation8], %s727
          %729 = dma.done %s725, 2048
        $region56: #{tpu_custom_call.1} parent=51 // pred_fallthru
          _
      $region52: #{tpu_custom_call.1} parent=5 // pred_fallthru
        _
    $region6: #{tpu_custom_call.1} parent=1 // loop_footer
      %s20 = sadd.s32 1, %s16
    $region7: #{tpu_custom_call.1} parent=1 // loop_footer_branch
      %15 = sbr.rel target = $region3
    $region8: #{tpu_custom_call.1} parent=1 // loop_exit
      _
    %730 = vsyncpa [#allocation3], 1
    %s731 = scalar_lea.sflag [#allocation3], 1
    %732 = vsyncpa %s731, 1
    %733 = vsyncpa [#allocation6], 1
    %734 = vsyncpa [#allocation4], 1
    %s735 = scalar_lea.sflag [#allocation4], 1
    %736 = vsyncpa %s735, 1

</llo_original>
